<compile_context>
chip_gen: v5e
topology: v5e:2x2
jax: 0.10.0
libtpu: 0.0.40
codegen_flags: <defaults>
</compile_context>

<pallas_src>
import functools

import jax
import jax.numpy as jnp
from jax.experimental import pallas as pl
from jax.experimental.pallas import tpu as pltpu

_LANES = 128
_STRIP = 512  # sublane-strip rows processed per inner-loop step


def _round_up(x, m):
    return ((x + m - 1) // m) * m


def _mse_kernel(a_ref, b_ref, o_ref, *, rows, tile_rows, strip,
                blocks_per_core, mask_start, needs_mask):
    """Accumulate sum((a-b)^2) of this core's row range into an (8,128) f32 block."""
    c = pl.program_id(0)   # core / parallel axis
    i = pl.program_id(1)   # reduction axis (output block VMEM-resident across it)

    @pl.when(i == 0)
    def _():
        o_ref[...] = jnp.zeros_like(o_ref)

    blk = c * blocks_per_core + i   # unclamped logical block index

    def accumulate(masked):
        row0 = blk * tile_rows

        def body(s, carry):
            r = pl.multiple_of(s * strip, strip)
            d = (a_ref[pl.ds(r, strip), :].astype(jnp.float32)
                 - b_ref[pl.ds(r, strip), :].astype(jnp.float32))
            if masked:
                # Mask BEFORE squaring so padded-garbage in the edge block is
                # discarded by the select and never propagates (NaN-safe).
                rid = row0 + r + jax.lax.broadcasted_iota(jnp.int32, d.shape, 0)
                d = jnp.where(rid < rows, d, jnp.float32(0.0))
            dd = d * d
            # Fold the strip into (strip//8, 8, 128) and reduce the leading
            # axis: pure VPU adds, no cross-lane work in the hot loop.
            o_ref[...] += dd.reshape(strip // 8, 8, _LANES).sum(axis=0)
            return carry

        jax.lax.fori_loop(0, tile_rows // strip, body, 0)

    if needs_mask:
        # Unmasked fast path for all steady-state blocks; masking only on the
        # ragged last block and on duplicated/clamped blocks past the end.
        @pl.when(blk < mask_start)
        def _():
            accumulate(masked=False)

        @pl.when(blk >= mask_start)
        def _():
            accumulate(masked=True)
    else:
        accumulate(masked=False)


def _tpu_kind():
    try:
        return jax.devices()[0].device_kind.lower()
    except Exception:
        return ""


def _hw_config(itemsize):
    """(num_cores, core-axis semantics, tile_rows target) for this chip."""
    kind = _tpu_kind()
    if "v7" in kind:                          # 2 TensorCores / chip
        num_cores, core_sem = 2, pltpu.CORE_PARALLEL
    elif "v4" in kind or "v5p" in kind:       # megacore chips
        num_cores, core_sem = 2, pltpu.PARALLEL
    else:                                     # v5e / v6e / unknown: single TC
        num_cores, core_sem = 1, pltpu.ARBITRARY
    # Per-input, per-pipeline-buffer block bytes: 4 MiB on v6e/v7x (32 MiB
    # scoped-VMEM default), 2 MiB elsewhere (2 inputs x 2 buffers = 8 MiB fits
    # v5e's 16 MiB default with headroom for strip temporaries).
    block_bytes = (4 << 20) if ("v6" in kind or "v7" in kind) else (2 << 20)
    tile_rows = block_bytes // (_LANES * itemsize)
    tile_rows = max(_STRIP, (tile_rows // _STRIP) * _STRIP)
    return num_cores, core_sem, tile_rows


def _mse_partial_sums(a2, b2, itemsize):
    """Pallas call returning (num_cores*8, 128) f32 partial sums of (a-b)^2."""
    rows = a2.shape[0]                 # multiple of the dtype sublane granularity
    num_cores, core_sem, tile_target = _hw_config(itemsize)

    if rows < _STRIP:
        t = rows                       # exact single block (full-extent dim)
        strip = rows
    else:
        t = min(tile_target, (rows // _STRIP) * _STRIP)
        strip = _STRIP

    total_blocks = pl.cdiv(rows, t)
    if total_blocks < num_cores:
        num_cores, core_sem = 1, pltpu.ARBITRARY
    blocks_per_core = pl.cdiv(total_blocks, num_cores)

    ragged = (rows % t) != 0
    mask_start = total_blocks - 1 if ragged else total_blocks
    needs_mask = mask_start < num_cores * blocks_per_core

    def in_map(c, i):
        # Clamp so the DMA never starts past the array; duplicated blocks are
        # fully zeroed by the in-kernel row mask.
        return (jnp.minimum(c * blocks_per_core + i, total_blocks - 1), 0)

    kernel = functools.partial(
        _mse_kernel, rows=rows, tile_rows=t, strip=strip,
        blocks_per_core=blocks_per_core, mask_start=mask_start,
        needs_mask=needs_mask)

    return pl.pallas_call(
        kernel,
        out_shape=jax.ShapeDtypeStruct((num_cores * 8, _LANES), jnp.float32),
        grid_spec=pltpu.PrefetchScalarGridSpec(
            num_scalar_prefetch=0,
            grid=(num_cores, blocks_per_core),
            in_specs=[pl.BlockSpec((t, _LANES), in_map),
                      pl.BlockSpec((t, _LANES), in_map)],
            out_specs=pl.BlockSpec((8, _LANES), lambda c, i: (c, 0)),
        ),
        compiler_params=pltpu.CompilerParams(
            dimension_semantics=(core_sem, pltpu.ARBITRARY)),
        cost_estimate=pl.CostEstimate(
            flops=3 * rows * _LANES,
            transcendentals=0,
            bytes_accessed=2 * rows * _LANES * itemsize
            + num_cores * 8 * _LANES * 4),
    )(a2, b2)


def mse_loss(img1, img2, alpha=0.9):
    """alpha * mean((img1 - img2)**2), matching torch.nn.MSELoss('mean')."""
    assert img1.shape == img2.shape, "MSELoss requires matching shapes"
    n = img1.size
    itemsize = jnp.dtype(img1.dtype).itemsize
    sub = max(8, 32 // max(itemsize, 1))   # sublane granularity per dtype

    a = img1.reshape(-1)
    b = img2.reshape(-1)

    rows = n // _LANES                     # full lane-rows
    rows_k = (rows // sub) * sub           # sublane-aligned rows for the kernel
    n_k = rows_k * _LANES                  # elements handled by the kernel

    # Ragged leftover (< sub lane-rows + <128-element tail, i.e. a few KiB at
    # most): plain jnp on a small slice, no full-array pad/copy.
    leftover = None
    if n_k < n:
        la = a[n_k:].astype(jnp.float32)
        lb = b[n_k:].astype(jnp.float32)
        leftover = jnp.sum((la - lb) ** 2)

    if rows_k == 0:
        total = leftover
    else:
        # Free reshape in the common case; on the rare ragged path the prefix
        # slice may materialize, which is still cheaper than padding both
        # operands and keeps the kernel path unchanged.
        a2 = (a[:n_k] if n_k < n else a).reshape(rows_k, _LANES)
        b2 = (b[:n_k] if n_k < n else b).reshape(rows_k, _LANES)
        partials = _mse_partial_sums(a2, b2, itemsize)
        total = jnp.sum(partials)
        if leftover is not None:
            total = total + leftover

    return (jnp.float32(alpha) / jnp.float32(n)) * total


if __name__ == "__main__":
    key = jax.random.PRNGKey(0)
    k1, k2, k3, k4, k5, k6 = jax.random.split(key, 6)

    # Small NCHW inputs consistent with an image-restoration loss.
    img1 = jax.random.normal(k1, (2, 4, 16, 16), dtype=jnp.float32)
    img2 = jax.random.normal(k2, (2, 4, 16, 16), dtype=jnp.float32)
    loss = jax.block_until_ready(mse_loss(img1, img2, alpha=0.9))
    ref = 0.9 * jnp.mean((img1 - img2) ** 2)
    assert jnp.allclose(loss, ref, rtol=1e-5, atol=1e-6), (loss, ref)

    # Ragged bf16 path (numel not a multiple of 128): leftover handled in the
    # wrapper, still bit-exact semantics vs. the f32 reference formula.
    x = jax.random.normal(k3, (2, 3, 15, 17), dtype=jnp.bfloat16)
    y = jax.random.normal(k4, (2, 3, 15, 17), dtype=jnp.bfloat16)
    loss2 = jax.block_until_ready(mse_loss(x, y, alpha=0.9))
    ref2 = 0.9 * jnp.mean((x.astype(jnp.float32) - y.astype(jnp.float32)) ** 2)
    assert jnp.allclose(loss2, ref2, rtol=1e-4, atol=1e-5), (loss2, ref2)

    # Multi-block f32 case that exercises the masked edge-block path
    # (520 lane-rows -> one full 512-row block + one partial block).
    u = jax.random.normal(k5, (2, 4, 130, 64), dtype=jnp.float32)
    v = jax.random.normal(k6, (2, 4, 130, 64), dtype=jnp.float32)
    loss3 = jax.block_until_ready(mse_loss(u, v, alpha=0.9))
    ref3 = 0.9 * jnp.mean((u - v) ** 2)
    assert jnp.allclose(loss3, ref3, rtol=1e-5, atol=1e-6), (loss3, ref3)

    print("KERNEL_OK")
</pallas_src>

<mosaic_0001>
module attributes {stable_mosaic.version = 11 : i64} {
  func.func @_mse_kernel(%arg0: i32, %arg1: i32, %arg2: memref<16x128xf32, #tpu.memory_space<vmem>>, %arg3: memref<16x128xf32, #tpu.memory_space<vmem>>, %arg4: memref<8x128xf32, #tpu.memory_space<vmem>>) attributes {dimension_semantics = [#tpu.dimension_semantics<arbitrary>, #tpu.dimension_semantics<arbitrary>], iteration_bounds = array<i64: 1, 1>, scalar_prefetch = 0 : i64, scratch_operands = 0 : i64, tpu.core_type = #tpu.core_type<tc>, window_params = [{transform_indices = @transform_0, window_bounds = array<i64: 16, 128>}, {transform_indices = @transform_1, window_bounds = array<i64: 16, 128>}, {transform_indices = @transform_2, window_bounds = array<i64: 8, 128>}]} {
    %c0_i32 = arith.constant 0 : i32
    %0 = arith.cmpi eq, %arg1, %c0_i32 : i32
    %1 = arith.extui %0 : i1 to i32
    %c0_i32_0 = arith.constant 0 : i32
    %2 = arith.cmpi ne, %1, %c0_i32_0 : i32
    scf.if %2 {
      %cst_7 = arith.constant 0.000000e+00 : f32
      %16 = vector.broadcast %cst_7 : f32 to vector<8x128xf32>
      %c0_8 = arith.constant 0 : index
      %c0_9 = arith.constant 0 : index
      %17 = vector.load %arg4[%c0_8, %c0_9] : memref<8x128xf32, #tpu.memory_space<vmem>>, vector<8x128xf32>
      tpu.vector_store %arg4[%c0_8, %c0_9], %16 {strides = array<i32>} : memref<8x128xf32, #tpu.memory_space<vmem>>, vector<8x128xf32>,
    } else {
    }
    %c0_i32_1 = arith.constant 0 : i32
    %c16_i32 = arith.constant 16 : i32
    %3 = arith.muli %c0_i32_1, %c16_i32 : i32
    %4 = tpu.assume_multiple %3, 16 : i32
    %5 = arith.index_cast %4 : i32 to index
    %c0 = arith.constant 0 : index
    %6 = vector.load %arg2[%5, %c0] : memref<16x128xf32, #tpu.memory_space<vmem>>, vector<16x128xf32>
    %7 = arith.index_cast %4 : i32 to index
    %c0_2 = arith.constant 0 : index
    %8 = vector.load %arg3[%7, %c0_2] : memref<16x128xf32, #tpu.memory_space<vmem>>, vector<16x128xf32>
    %9 = arith.subf %6, %8 : vector<16x128xf32>
    %10 = arith.mulf %9, %9 : vector<16x128xf32>
    %c0_3 = arith.constant 0 : index
    %c0_4 = arith.constant 0 : index
    %11 = vector.load %arg4[%c0_3, %c0_4] : memref<8x128xf32, #tpu.memory_space<vmem>>, vector<8x128xf32>
    %12 = vector.shape_cast %10 : vector<16x128xf32> to vector<2x8x128xf32>
    %cst = arith.constant dense<0.000000e+00> : vector<8x128xf32>
    %13 = vector.multi_reduction <add>, %12, %cst [0] : vector<2x8x128xf32> to vector<8x128xf32>
    %14 = arith.addf %11, %13 : vector<8x128xf32>
    %c0_5 = arith.constant 0 : index
    %c0_6 = arith.constant 0 : index
    %15 = vector.load %arg4[%c0_5, %c0_6] : memref<8x128xf32, #tpu.memory_space<vmem>>, vector<8x128xf32>
    tpu.vector_store %arg4[%c0_5, %c0_6], %14 {strides = array<i32>} : memref<8x128xf32, #tpu.memory_space<vmem>>, vector<8x128xf32>,
    %c1_i32 = arith.constant 1 : i32
    return
  }
  func.func @transform_0(%arg0: i32, %arg1: i32) -> (i32, i32) {
    %c1_i32 = arith.constant 1 : i32
    %0 = arith.muli %arg0, %c1_i32 : i32
    %1 = arith.addi %0, %arg1 : i32
    %c0_i32 = arith.constant 0 : i32
    %2 = arith.minsi %1, %c0_i32 : i32
    %c0_i32_0 = arith.constant 0 : i32
    %c0_i32_1 = arith.constant 0 : i32
    return %2, %c0_i32_0 : i32, i32
  }
  func.func @transform_1(%arg0: i32, %arg1: i32) -> (i32, i32) {
    %c1_i32 = arith.constant 1 : i32
    %0 = arith.muli %arg0, %c1_i32 : i32
    %1 = arith.addi %0, %arg1 : i32
    %c0_i32 = arith.constant 0 : i32
    %2 = arith.minsi %1, %c0_i32 : i32
    %c0_i32_0 = arith.constant 0 : i32
    %c0_i32_1 = arith.constant 0 : i32
    return %2, %c0_i32_0 : i32, i32
  }
  func.func @transform_2(%arg0: i32, %arg1: i32) -> (i32, i32) {
    %c0_i32 = arith.constant 0 : i32
    %c0_i32_0 = arith.constant 0 : i32
    return %arg0, %c0_i32 : i32, i32
  }
}

</mosaic_0001>

<llo_original>
// kernel: tpu_custom_call.1
$region0: #{tpu_custom_call.1}
  #allocation0 [shape = 'u32[]', space=smem, size = 0x4, offset = 0x4, fixed_abs, tag = 'smem constant byte address 0x4 - core index']
  #allocation1 [shape = 'u32[72,128]{1,0:T(1,128)}', space=vmem, size = 0x9000, scoped, tag = 'internal scratch']
  %s0 = inlined_call_operand.hbm [shape: f32[16,128], index: 0, kind: input, shape index: {}]
  %s1 = inlined_call_operand.hbm [shape: f32[16,128], index: 1, kind: input, shape index: {}]
  %s2 = inlined_call_operand.hbm [shape: f32[8,128], index: 2, kind: output, shape index: {}]
  %s3 = sld [smem:[#allocation0]]
  $region30: #{tpu_custom_call.1} parent=0
    _
  %s5 = ssub.s32 1, %s3
  %s6 = scalar_select 0, %s5, %s3
  $region1: #{tpu_custom_call.1} parent=0
    #allocation2 [shape = 'u8[8192]{0}', space=vmem, size = 0x2000, scoped, tag = 'input window, operand 0, single buffered']
    #allocation3 [shape = 's32[1]{0}', space=sflag, size = 0x4, scoped, tag = 'scoped memory for tpu_custom_call.1']
    #allocation4 [shape = 's32[1]{0}', space=sflag, size = 0x4, scoped, tag = 'scoped memory for tpu_custom_call.1']
    #allocation5 [shape = 'u8[8192]{0}', space=vmem, size = 0x2000, scoped, tag = 'input window, operand 1, single buffered']
    #allocation6 [shape = 's32[1]{0}', space=sflag, size = 0x4, scoped, tag = 'scoped memory for tpu_custom_call.1']
    #allocation7 [shape = 'u8[4096]{0}', space=vmem, size = 0x1000, scoped, tag = 'output window, operand 0, single buffered']
    %7 = vsyncpa [#allocation3], 0
    %8 = vsyncpa [#allocation6], 0
    %9 = vsyncpa [#allocation4], 0
    // Predicated region
    $region2: #{tpu_custom_call.1} parent=1 // pred_check
      _
    $region3: #{tpu_custom_call.1} parent=1 // pred_check_branch
      %11 = sbr.rel (0) target = $region5
    $region4: #{tpu_custom_call.1} parent=1 // pred_region
      %s12 = sadd.s32 0, 0
      %p13 = scmp.lt.s32.totalorder %s12, 0
      %s14 = scalar_select %p13, %s12, 0
      %s15 = smul.u32 2, %s14
      %17 = vsyncadd [#allocation3], 0
      %s18 = smul.addr %s15, 8
      %s19 = scalar_lea.hbm %s0, %s18
      %s20 = sshll.u32 %s19, 4
      %s21 = int_to_ptr.hbm [resolvable:$true] %s20
      %s22 = sshll.u32 [#allocation2], 4
      %s23 = int_to_ptr.vmem [resolvable:$true] %s22
      %28 = dma.hbm_to_vmem [thread:$0]  %s21, 256, %s23, [#allocation3], 128, 128, 8
    $region5: #{tpu_custom_call.1} parent=1 // pred_fallthru
      _
    // Predicated region
    $region6: #{tpu_custom_call.1} parent=1 // pred_check
      _
    $region7: #{tpu_custom_call.1} parent=1 // pred_check_branch
      %30 = sbr.rel (0) target = $region9
    $region8: #{tpu_custom_call.1} parent=1 // pred_region
      %s31 = sadd.s32 0, 0
      %p32 = scmp.lt.s32.totalorder %s31, 0
      %s33 = scalar_select %p32, %s31, 0
      %s34 = smul.u32 2, %s33
      %36 = vsyncadd [#allocation6], 0
      %s37 = smul.addr %s34, 8
      %s38 = scalar_lea.hbm %s1, %s37
      %s39 = sshll.u32 %s38, 4
      %s40 = int_to_ptr.hbm [resolvable:$true] %s39
      %s41 = sshll.u32 [#allocation5], 4
      %s42 = int_to_ptr.vmem [resolvable:$true] %s41
      %47 = dma.hbm_to_vmem [thread:$0]  %s40, 256, %s42, [#allocation6], 128, 128, 8
    $region9: #{tpu_custom_call.1} parent=1 // pred_fallthru
      _
    // Predicated region
    $region10: #{tpu_custom_call.1} parent=1 // pred_check
      _
    $region11: #{tpu_custom_call.1} parent=1 // pred_check_branch
      %49 = sbr.rel (0) target = $region13
    $region12: #{tpu_custom_call.1} parent=1 // pred_region
      %51 = dma.done [#allocation3], 256
    $region13: #{tpu_custom_call.1} parent=1 // pred_fallthru
      _
    // Predicated region
    $region14: #{tpu_custom_call.1} parent=1 // pred_check
      _
    $region15: #{tpu_custom_call.1} parent=1 // pred_check_branch
      %53 = sbr.rel (0) target = $region17
    $region16: #{tpu_custom_call.1} parent=1 // pred_region
      %55 = dma.done [#allocation6], 256
    $region17: #{tpu_custom_call.1} parent=1 // pred_fallthru
      _
    %s56 = sadd.s32 0, 0
    %p57 = scmp.lt.s32.totalorder %s56, 0
    %s58 = scalar_select %p57, %s56, 0
    %s59 = smul.u32 2, %s58
    %s60 = sadd.s32 0, 0
    %p61 = scmp.lt.s32.totalorder %s60, 0
    %s62 = scalar_select %p61, %s60, 0
    %s63 = smul.u32 2, %s62
    %p64 = scmp.eq.s32.totalorder 0, 0
    // Predicated region
    $region18: #{tpu_custom_call.1} parent=1 // pred_check
      %p65 = pneg %p64
    $region19: #{tpu_custom_call.1} parent=1 // pred_check_branch
      %67 = sbr.rel (%p65) target = $region21
    $region20: #{tpu_custom_call.1} parent=1 // pred_region
      %68 = vst [vmem:[#allocation7] sm:$0xff] 0.0
    $region21: #{tpu_custom_call.1} parent=1 // pred_fallthru
      _
    %v69 = vld [vmem:[#allocation2] sm:$0xff]
    %v70 = vld [vmem:[#allocation2 + $0x8] sm:$0xff]
    %v71 = vld [vmem:[#allocation5] sm:$0xff]
    %v72 = vld [vmem:[#allocation5 + $0x8] sm:$0xff]
    %v73 = vsub.f32 %v69, %v71
    %v74 = vsub.f32 %v70, %v72
    %v75 = vmul.f32 %v73, %v73
    %v76 = vmul.f32 %v74, %v74
    %v77 = vld [vmem:[#allocation7] sm:$0xff]
    %v78 = vadd.f32 %v75, %v76
    %v79 = vadd.f32 %v77, %v78
    %80 = vst [vmem:[#allocation7] sm:$0xff] %v79
    // Predicated region
    $region22: #{tpu_custom_call.1} parent=1 // pred_check
      _
    $region23: #{tpu_custom_call.1} parent=1 // pred_check_branch
      %82 = sbr.rel (0) target = $region25
    $region24: #{tpu_custom_call.1} parent=1 // pred_region
      %84 = vsyncadd [#allocation4], 0
      %s86 = sshll.u32 [#allocation7], 4
      %s87 = int_to_ptr.vmem [resolvable:$true] %s86
      %s88 = sshll.u32 %s2, 4
      %s89 = int_to_ptr.hbm [resolvable:$true] %s88
      %91 = dma.vmem_to_hbm [thread:$0]  %s87, 128, %s89, [#allocation4]
    $region25: #{tpu_custom_call.1} parent=1 // pred_fallthru
      _
    // Predicated region
    $region26: #{tpu_custom_call.1} parent=1 // pred_check
      _
    $region27: #{tpu_custom_call.1} parent=1 // pred_check_branch
      %93 = sbr.rel (0) target = $region29
    $region28: #{tpu_custom_call.1} parent=1 // pred_region
      %95 = dma.done [#allocation4], 128
    $region29: #{tpu_custom_call.1} parent=1 // pred_fallthru
      _
    %96 = vsyncpa [#allocation3], 1
    %97 = vsyncpa [#allocation6], 1
    %98 = vsyncpa [#allocation4], 1

</llo_original>
